<compile_context>
chip_gen: v7x
topology: tpu7x:2x2x1
jax: 0.10.0
libtpu: 0.0.40
codegen_flags: <defaults>
</compile_context>

<pallas_src>
import numpy as np
import jax
import jax.numpy as jnp
from jax.experimental import pallas as pl
from jax.experimental.pallas import tpu as pltpu


# ---------------------------------------------------------------------------
# Host-side parameter construction (deterministic, mirrors ISTFT.__init__)
# ---------------------------------------------------------------------------
def _make_istft_params(nfft, hop, nframes, scaled=False):
    """Returns (wr_t, wi_t, inv_wsum_t):
         wr_t       : (nfft, nbins) f32  transposed real iDFT weights (Hermitian-folded)
         wi_t       : (nfft, nbins) f32  transposed, negated imag iDFT weights
         inv_wsum_t : (hop, nrows)  f32  1 / clamp(window-sum, 1e-11) in OLA layout
    """
    assert nfft % 2 == 0
    n = np.arange(nfft)
    # librosa.filters.get_window('hann', nfft, fftbins=True) == periodic hann
    hann = 0.5 - 0.5 * np.cos(2.0 * np.pi * n / nfft)
    nbins = nfft // 2 + 1
    k = np.arange(nbins)
    ang = 2.0 * np.pi * np.outer(k, n) / nfft                    # (nbins, nfft)
    scale = 0.5 if scaled else 1.0 / nfft
    # Hermitian fold: interior bins count twice, DC/Nyquist once.
    c = np.full((nbins, 1), 2.0)
    c[0, 0] = 1.0
    c[-1, 0] = 1.0
    wr_t = (c * np.cos(ang) * hann[None, :] * scale).T           # (nfft, nbins)
    wi_t = (-(c * np.sin(ang) * hann[None, :] * scale)).T        # (nfft, nbins)

    # Data-independent window-sum denominator -> precompute reciprocal on host.
    R = nfft // hop
    nrows = nframes + R - 1
    output_samples = nrows * hop                                 # == (nframes-1)*hop + nfft
    ola = hann.astype(np.float64) ** 2                           # normalize(norm=None) is identity
    wsum = np.zeros(output_samples, np.float64)
    for t in range(nframes):
        wsum[t * hop:t * hop + nfft] += ola
    wsum = np.clip(wsum, 1e-11, None)                            # clamp BEFORE reciprocal
    inv_wsum_t = (1.0 / wsum).reshape(nrows, hop).T              # (hop, nrows)

    return (wr_t.astype(np.float32), wi_t.astype(np.float32),
            inv_wsum_t.astype(np.float32))


# ---------------------------------------------------------------------------
# Pallas kernel: time-major inverse-DFT matmuls + in-register overlap-add
# ---------------------------------------------------------------------------
def _make_istft_kernel(nframes, hop, R):
    def kernel(real_ref, imag_ref, wr_ref, wi_ref, inv_ref, y_ref):
        # bf16 operands (single-pass MXU), f32 accumulation.  The inverse DFT is
        # computed with nfft as the MXU M dimension, so the systolic array is
        # fully occupied regardless of nframes / batch size.
        xr = real_ref[0].astype(jnp.bfloat16)                    # (nbins, nframes)
        xi = imag_ref[0].astype(jnp.bfloat16)
        s_t = (jnp.dot(wr_ref[...], xr, preferred_element_type=jnp.float32)
               + jnp.dot(wi_ref[...], xi, preferred_element_type=jnp.float32))
        # s_t[n, t] = time-sample n of frame t, shape (nfft, nframes), f32.

        # Overlap-add fully in vregs (no scratch read-modify-write, one store):
        # output sample j*hop + n = sum_r s_t[r*hop + n, j - r].  Each r term is a
        # zero-padded (hop, nrows) block; the lane axis is nrows (lane-dense for
        # long spectrograms).
        acc = None
        for r in range(R):
            seg = s_t[r * hop:(r + 1) * hop, :]                  # (hop, nframes)
            parts = []
            if r > 0:
                parts.append(jnp.zeros((hop, r), jnp.float32))
            parts.append(seg)
            if R - 1 - r > 0:
                parts.append(jnp.zeros((hop, R - 1 - r), jnp.float32))
            term = parts[0] if len(parts) == 1 else jnp.concatenate(parts, axis=1)
            acc = term if acc is None else acc + term            # (hop, nrows) f32

        # Window-sum normalization with the precomputed reciprocal (f32).
        y_ref[0] = (acc * inv_ref[...]).astype(y_ref.dtype)

    return kernel


# ---------------------------------------------------------------------------
# Wrapper
# ---------------------------------------------------------------------------
def istft_pallas(real_stft, imag_stft, nfft, hop_size=None, scaled=False,
                 length=None):
    hop = hop_size if hop_size else nfft // 4
    # TODO(synk): hop sizes that do not divide nfft need a per-frame OLA fallback.
    assert nfft % hop == 0, "fast overlap-add path requires nfft % hop == 0"

    bs, nbins, nframes = real_stft.shape
    assert imag_stft.shape == (bs, nbins, nframes)
    assert nbins == nfft // 2 + 1

    R = nfft // hop
    nrows = nframes + R - 1
    output_samples = nrows * hop

    wr_t, wi_t, inv_wsum_t = _make_istft_params(nfft, hop, nframes, scaled)
    # bf16 weights -> single-pass MXU; activations are cast to bf16 inside the
    # kernel (no extra HBM pass).  OLA + normalization stay in f32.
    wr_t = jnp.asarray(wr_t, dtype=jnp.bfloat16)
    wi_t = jnp.asarray(wi_t, dtype=jnp.bfloat16)
    inv_wsum_t = jnp.asarray(inv_wsum_t)

    real_stft = real_stft.astype(jnp.float32)
    imag_stft = imag_stft.astype(jnp.float32)

    # VMEM budget derived from the actual generation (64 MiB v7x, 128 MiB v5e/v6e).
    try:
        vmem_cap = int(pltpu.get_tpu_info().vmem_capacity_bytes)
    except Exception:                                            # pragma: no cover
        vmem_cap = 64 * 1024 * 1024
    est_bytes = (
        2 * 2 * (nbins * nframes * 4)        # real+imag blocks, double-buffered
        + 2 * (nfft * nbins * 2)             # bf16 weights, single VMEM copy each
        + hop * nrows * 4                    # 1/wsum, single copy
        + 2 * (hop * nrows * 4)              # output block, double-buffered
        + (nfft * nframes + 2 * hop * nrows) * 4  # in-register s_t / OLA temporaries
    )
    vmem_limit = int(min(max(2 * est_bytes, 32 * 1024 * 1024),
                         int(0.75 * vmem_cap)))

    # TODO(synk): when bs == 1 add a parallel frame-tile grid axis (with tiny
    # wrapper-side seam adds) so v7x's second TensorCore is not idle and VMEM is
    # bounded for very long spectrograms.
    y_blocks = pl.pallas_call(
        _make_istft_kernel(nframes, hop, R),
        out_shape=jax.ShapeDtypeStruct((bs, hop, nrows), jnp.float32),
        grid_spec=pltpu.PrefetchScalarGridSpec(
            num_scalar_prefetch=0,
            grid=(bs,),
            in_specs=[
                pl.BlockSpec((1, nbins, nframes), lambda b: (b, 0, 0)),  # real
                pl.BlockSpec((1, nbins, nframes), lambda b: (b, 0, 0)),  # imag
                # Grid-invariant operands: whole array, single VMEM copy.
                pl.BlockSpec(memory_space=pltpu.MemorySpace.VMEM),       # Wr^T
                pl.BlockSpec(memory_space=pltpu.MemorySpace.VMEM),       # Wi^T
                pl.BlockSpec(memory_space=pltpu.MemorySpace.VMEM),       # 1/wsum
            ],
            out_specs=pl.BlockSpec((1, hop, nrows), lambda b: (b, 0, 0)),
        ),
        compiler_params=pltpu.CompilerParams(
            dimension_semantics=("parallel",),
            vmem_limit_bytes=vmem_limit,
        ),
    )(real_stft, imag_stft, wr_t, wi_t, inv_wsum_t)

    # y_blocks[b, n, j] is output sample j*hop + n -> transpose + flatten.
    y = jnp.transpose(y_blocks, (0, 2, 1)).reshape(bs, output_samples)
    if length:
        y = y[:, nfft // 2: nfft // 2 + length]
    else:
        y = y[:, nfft // 2: -(nfft // 2)]
    return y


# ---------------------------------------------------------------------------
# Pure-numpy reference (mirrors the original PyTorch module exactly)
# ---------------------------------------------------------------------------
def istft_ref(real_stft, imag_stft, nfft, hop, scaled=False):
    n = np.arange(nfft)
    hann = 0.5 - 0.5 * np.cos(2.0 * np.pi * n / nfft)
    w = np.exp(2j * np.pi * np.outer(n, n) / nfft) * hann[None, :]
    w = w / 2 if scaled else w / nfft
    w_real, w_imag = w.real, w.imag
    ola = hann ** 2

    bs, _, nframes = real_stft.shape
    full_real = np.concatenate(
        [real_stft, real_stft[:, 1:-1, :][:, ::-1, :]], axis=1)
    full_imag = np.concatenate(
        [imag_stft, -imag_stft[:, 1:-1, :][:, ::-1, :]], axis=1)
    s = (np.einsum('kn,bkt->bnt', w_real, full_real)
         - np.einsum('kn,bkt->bnt', w_imag, full_imag))

    out = (nframes - 1) * hop + nfft
    y = np.zeros((bs, out), np.float64)
    wsum = np.zeros(out, np.float64)
    for t in range(nframes):
        y[:, t * hop:t * hop + nfft] += s[:, :, t]
        wsum[t * hop:t * hop + nfft] += ola
    wsum = np.clip(wsum, 1e-11, np.inf)
    y = y / wsum[None, :]
    return y[:, nfft // 2: -(nfft // 2)]


if __name__ == "__main__":
    nfft = 128
    hop = nfft // 4            # hop_size=None path -> nfft // 4
    bs = 2
    nframes = 8
    nbins = nfft // 2 + 1      # 65

    key = jax.random.PRNGKey(0)
    k1, k2 = jax.random.split(key)
    real_stft = jax.random.normal(k1, (bs, nbins, nframes), dtype=jnp.float32)
    imag_stft = jax.random.normal(k2, (bs, nbins, nframes), dtype=jnp.float32)

    y = istft_pallas(real_stft, imag_stft, nfft, hop_size=None, scaled=False)
    y = jax.block_until_ready(y)

    y_ref = istft_ref(np.asarray(real_stft, np.float64),
                      np.asarray(imag_stft, np.float64), nfft, hop)
    np.testing.assert_allclose(np.asarray(y, np.float64), y_ref,
                               rtol=5e-3, atol=5e-3)

    print("KERNEL_OK")
</pallas_src>

<mosaic_0001>
module attributes {stable_mosaic.version = 11 : i64} {
  func.func @kernel(%arg0: i32, %arg1: memref<1x65x8xf32, #tpu.memory_space<vmem>>, %arg2: memref<1x65x8xf32, #tpu.memory_space<vmem>>, %arg3: memref<128x65xbf16, #tpu.memory_space<vmem>>, %arg4: memref<128x65xbf16, #tpu.memory_space<vmem>>, %arg5: memref<32x11xf32, #tpu.memory_space<vmem>>, %arg6: memref<1x32x11xf32, #tpu.memory_space<vmem>>) attributes {dimension_semantics = [#tpu.dimension_semantics<parallel>], iteration_bounds = array<i64: 2>, scalar_prefetch = 0 : i64, scratch_operands = 0 : i64, tpu.core_type = #tpu.core_type<tc>, window_params = [{transform_indices = @transform_0, window_bounds = array<i64: 1, 65, 8>}, {transform_indices = @transform_1, window_bounds = array<i64: 1, 65, 8>}, {pipeline_mode = #tpu.pipeline_mode<synchronous>, transform_indices = @transform_2, window_bounds = array<i64: 128, 65>}, {pipeline_mode = #tpu.pipeline_mode<synchronous>, transform_indices = @transform_3, window_bounds = array<i64: 128, 65>}, {pipeline_mode = #tpu.pipeline_mode<synchronous>, transform_indices = @transform_4, window_bounds = array<i64: 32, 11>}, {transform_indices = @transform_5, window_bounds = array<i64: 1, 32, 11>}]} {
    %c0 = arith.constant 0 : index
    %c0_0 = arith.constant 0 : index
    %c0_1 = arith.constant 0 : index
    %0 = vector.load %arg1[%c0, %c0_0, %c0_1] : memref<1x65x8xf32, #tpu.memory_space<vmem>>, vector<1x65x8xf32>
    %1 = vector.shape_cast %0 : vector<1x65x8xf32> to vector<65x8xf32>
    %2 = arith.truncf %1 : vector<65x8xf32> to vector<65x8xbf16>
    %c0_2 = arith.constant 0 : index
    %c0_3 = arith.constant 0 : index
    %c0_4 = arith.constant 0 : index
    %3 = vector.load %arg2[%c0_2, %c0_3, %c0_4] : memref<1x65x8xf32, #tpu.memory_space<vmem>>, vector<1x65x8xf32>
    %4 = vector.shape_cast %3 : vector<1x65x8xf32> to vector<65x8xf32>
    %5 = arith.truncf %4 : vector<65x8xf32> to vector<65x8xbf16>
    %c0_5 = arith.constant 0 : index
    %c0_6 = arith.constant 0 : index
    %6 = vector.load %arg3[%c0_5, %c0_6] : memref<128x65xbf16, #tpu.memory_space<vmem>>, vector<128x65xbf16>
    %cst = arith.constant dense<0.000000e+00> : vector<128x8xf32>
    %7 = tpu.matmul %6, %2, %cst {dimension_numbers = #tpu.dot_dimension_numbers<[1], [0], [0], [1], [0, 0, 1, 1], [], []>} : vector<128x65xbf16>, vector<65x8xbf16>, vector<128x8xf32> -> vector<128x8xf32>
    %c0_7 = arith.constant 0 : index
    %c0_8 = arith.constant 0 : index
    %8 = vector.load %arg4[%c0_7, %c0_8] : memref<128x65xbf16, #tpu.memory_space<vmem>>, vector<128x65xbf16>
    %cst_9 = arith.constant dense<0.000000e+00> : vector<128x8xf32>
    %9 = tpu.matmul %8, %5, %cst_9 {dimension_numbers = #tpu.dot_dimension_numbers<[1], [0], [0], [1], [0, 0, 1, 1], [], []>} : vector<128x65xbf16>, vector<65x8xbf16>, vector<128x8xf32> -> vector<128x8xf32>
    %10 = arith.addf %7, %9 : vector<128x8xf32>
    %11 = vector.extract_strided_slice %10 {offsets = [0, 0], sizes = [32, 8], strides = [1, 1]} : vector<128x8xf32> to vector<32x8xf32>
    %cst_10 = arith.constant 0.000000e+00 : f32
    %12 = vector.broadcast %cst_10 : f32 to vector<32x3xf32>
    %13 = tpu.concatenate %11, %12 in 1 : vector<32x8xf32>, vector<32x3xf32> -> vector<32x11xf32>
    %14 = vector.extract_strided_slice %10 {offsets = [32, 0], sizes = [32, 8], strides = [1, 1]} : vector<128x8xf32> to vector<32x8xf32>
    %cst_11 = arith.constant 0.000000e+00 : f32
    %15 = vector.broadcast %cst_11 : f32 to vector<32x1xf32>
    %cst_12 = arith.constant 0.000000e+00 : f32
    %16 = vector.broadcast %cst_12 : f32 to vector<32x2xf32>
    %17 = tpu.concatenate %15, %14, %16 in 1 : vector<32x1xf32>, vector<32x8xf32>, vector<32x2xf32> -> vector<32x11xf32>
    %18 = arith.addf %13, %17 : vector<32x11xf32>
    %19 = vector.extract_strided_slice %10 {offsets = [64, 0], sizes = [32, 8], strides = [1, 1]} : vector<128x8xf32> to vector<32x8xf32>
    %cst_13 = arith.constant 0.000000e+00 : f32
    %20 = vector.broadcast %cst_13 : f32 to vector<32x2xf32>
    %cst_14 = arith.constant 0.000000e+00 : f32
    %21 = vector.broadcast %cst_14 : f32 to vector<32x1xf32>
    %22 = tpu.concatenate %20, %19, %21 in 1 : vector<32x2xf32>, vector<32x8xf32>, vector<32x1xf32> -> vector<32x11xf32>
    %23 = arith.addf %18, %22 : vector<32x11xf32>
    %24 = vector.extract_strided_slice %10 {offsets = [96, 0], sizes = [32, 8], strides = [1, 1]} : vector<128x8xf32> to vector<32x8xf32>
    %cst_15 = arith.constant 0.000000e+00 : f32
    %25 = vector.broadcast %cst_15 : f32 to vector<32x3xf32>
    %26 = tpu.concatenate %25, %24 in 1 : vector<32x3xf32>, vector<32x8xf32> -> vector<32x11xf32>
    %27 = arith.addf %23, %26 : vector<32x11xf32>
    %c0_16 = arith.constant 0 : index
    %c0_17 = arith.constant 0 : index
    %28 = vector.load %arg5[%c0_16, %c0_17] : memref<32x11xf32, #tpu.memory_space<vmem>>, vector<32x11xf32>
    %29 = arith.mulf %27, %28 : vector<32x11xf32>
    %c0_18 = arith.constant 0 : index
    %c0_19 = arith.constant 0 : index
    %c0_20 = arith.constant 0 : index
    %30 = vector.load %arg6[%c0_18, %c0_19, %c0_20] : memref<1x32x11xf32, #tpu.memory_space<vmem>>, vector<1x32x11xf32>
    %31 = vector.shape_cast %30 : vector<1x32x11xf32> to vector<32x11xf32>
    %32 = vector.shape_cast %29 : vector<32x11xf32> to vector<1x32x11xf32>
    tpu.vector_store %arg6[%c0_18, %c0_19, %c0_20], %32 {strides = array<i32>} : memref<1x32x11xf32, #tpu.memory_space<vmem>>, vector<1x32x11xf32>,
    return
  }
  func.func @transform_0(%arg0: i32) -> (i32, i32, i32) {
    %c0_i32 = arith.constant 0 : i32
    %c0_i32_0 = arith.constant 0 : i32
    %c0_i32_1 = arith.constant 0 : i32
    return %arg0, %c0_i32, %c0_i32_0 : i32, i32, i32
  }
  func.func @transform_1(%arg0: i32) -> (i32, i32, i32) {
    %c0_i32 = arith.constant 0 : i32
    %c0_i32_0 = arith.constant 0 : i32
    %c0_i32_1 = arith.constant 0 : i32
    return %arg0, %c0_i32, %c0_i32_0 : i32, i32, i32
  }
  func.func @transform_2(%arg0: i32) -> (i32, i32) {
    %c0_i32 = arith.constant 0 : i32
    %c0_i32_0 = arith.constant 0 : i32
    %c0_i32_1 = arith.constant 0 : i32
    return %c0_i32, %c0_i32_0 : i32, i32
  }
  func.func @transform_3(%arg0: i32) -> (i32, i32) {
    %c0_i32 = arith.constant 0 : i32
    %c0_i32_0 = arith.constant 0 : i32
    %c0_i32_1 = arith.constant 0 : i32
    return %c0_i32, %c0_i32_0 : i32, i32
  }
  func.func @transform_4(%arg0: i32) -> (i32, i32) {
    %c0_i32 = arith.constant 0 : i32
    %c0_i32_0 = arith.constant 0 : i32
    %c0_i32_1 = arith.constant 0 : i32
    return %c0_i32, %c0_i32_0 : i32, i32
  }
  func.func @transform_5(%arg0: i32) -> (i32, i32, i32) {
    %c0_i32 = arith.constant 0 : i32
    %c0_i32_0 = arith.constant 0 : i32
    %c0_i32_1 = arith.constant 0 : i32
    return %arg0, %c0_i32, %c0_i32_0 : i32, i32, i32
  }
}

</mosaic_0001>

<llo_original>
// kernel: tpu_custom_call.1
$region0: #{tpu_custom_call.1}
  #allocation0 [shape = 'u32[]', space=smem, size = 0x4, offset = 0x4, fixed_abs, tag = 'smem constant byte address 0x4 - core index']
  #allocation1 [shape = 'u32[144,128]{1,0:T(1,128)}', space=vmem, size = 0x12000, scoped, tag = 'internal scratch']
  %s0 = inlined_call_operand.vmem [shape: f32[2,65,8], index: 0, kind: input, shape index: {}]
  %s1 = inlined_call_operand.vmem [shape: f32[2,65,8], index: 1, kind: input, shape index: {}]
  %s2 = inlined_call_operand.vmem [shape: bf16[128,65], index: 2, kind: input, shape index: {}]
  %s3 = inlined_call_operand.vmem [shape: bf16[128,65], index: 3, kind: input, shape index: {}]
  %s4 = inlined_call_operand.vmem [shape: f32[32,11], index: 4, kind: input, shape index: {}]
  %s5 = inlined_call_operand.vmem [shape: f32[2,32,11], index: 5, kind: output, shape index: {}]
  %s6 = sld [smem:[#allocation0]]
  $region53: #{tpu_custom_call.1} parent=0
    _
  %s8 = ssub.s32 1, %s6
  %s9 = scalar_select 0, %s8, %s6
  loop: start=0, step=1, limit=4
  $region2: #{tpu_custom_call.1} parent=0 // loop_pre_header
    _
  $region3: #{tpu_custom_call.1} parent=0 // loop_header
    %s11 = sphi 0, %s15
    %p12 = scmp.ge.s32.totalorder %s11, 4
    %s21 = sphi 0, %s23
    %s24 = sphi 0, %s21
    %s25 = sphi 0, %s24
    %s41 = sphi 0, %s25
    %s47 = sphi 0, %s49
    %s50 = sphi 0, %s47
    %s51 = sphi 0, %s50
    %s67 = sphi 0, %s51
    %s71 = sphi 0, %s71
    %s73 = sphi 0, %s71
    %s74 = sphi 0, %s73
    %s88 = sphi 0, %s74
    %s92 = sphi 0, %s92
    %s94 = sphi 0, %s92
    %s95 = sphi 0, %s94
    %s109 = sphi 0, %s95
    %s113 = sphi 0, %s113
    %s115 = sphi 0, %s113
    %s116 = sphi 0, %s115
    %s130 = sphi 0, %s116
    %s136 = sphi 0, %s138
    %s139 = sphi 0, %s136
    %s140 = sphi 0, %s139
    %s156 = sphi 0, %s140
  $region4: #{tpu_custom_call.1} parent=0 // loop_header_branch
    %14 = sbr.rel (%p12) target = $region8
  $region5: #{tpu_custom_call.1} parent=0 // loop_body
    %s16 = ssub.s32 %s11, 1
    %s17 = ssub.s32 %s11, 2
    %s18 = sadd.s32 %s11, 1
    %s19 = ssub.s32 %s11, %s18
    %p20 = scmp.eq.s32.totalorder %s19, 0
    %s22 = sadd.s32 %s21, 1
    %s23 = scalar_select %p20, %s21, %s22
    %p26 = pneg %p20
    %p27 = scmp.eq.s32.totalorder %s11, 1
    %p28 = por %p26, %p27
    %p29 = scmp.ne.s32.totalorder %s21, %s24
    %p30 = scmp.eq.s32.totalorder %s11, 0
    %p31 = por %p29, %p30
    %p32 = scmp.ne.s32.totalorder %s21, %s24
    %p33 = scmp.eq.s32.totalorder %s16, 1
    %p34 = por %p32, %p33
    %p35 = scmp.ne.s32.totalorder %s24, %s25
    %p36 = scmp.eq.s32.totalorder %s16, 0
    %p37 = por %p35, %p36
    %p38 = scmp.ne.s32.totalorder %s24, %s25
    %p39 = scmp.eq.s32.totalorder %s17, 1
    %p40 = por %p38, %p39
    %p42 = scmp.ne.s32.totalorder %s25, %s41
    %p43 = scmp.eq.s32.totalorder %s17, 0
    %p44 = por %p42, %p43
    %s45 = ssub.s32 %s11, %s18
    %p46 = scmp.eq.s32.totalorder %s45, 0
    %s48 = sadd.s32 %s47, 1
    %s49 = scalar_select %p46, %s47, %s48
    %p52 = pneg %p46
    %p53 = scmp.eq.s32.totalorder %s11, 1
    %p54 = por %p52, %p53
    %p55 = scmp.ne.s32.totalorder %s47, %s50
    %p56 = scmp.eq.s32.totalorder %s11, 0
    %p57 = por %p55, %p56
    %p58 = scmp.ne.s32.totalorder %s47, %s50
    %p59 = scmp.eq.s32.totalorder %s16, 1
    %p60 = por %p58, %p59
    %p61 = scmp.ne.s32.totalorder %s50, %s51
    %p62 = scmp.eq.s32.totalorder %s16, 0
    %p63 = por %p61, %p62
    %p64 = scmp.ne.s32.totalorder %s50, %s51
    %p65 = scmp.eq.s32.totalorder %s17, 1
    %p66 = por %p64, %p65
    %p68 = scmp.ne.s32.totalorder %s51, %s67
    %p69 = scmp.eq.s32.totalorder %s17, 0
    %p70 = por %p68, %p69
    %s72 = sadd.s32 %s71, 1
    %p75 = scmp.eq.s32.totalorder %s11, 1
    %p76 = scmp.ne.s32.totalorder %s71, %s73
    %p77 = scmp.eq.s32.totalorder %s11, 0
    %p78 = por %p76, %p77
    %p79 = scmp.ne.s32.totalorder %s71, %s73
    %p80 = scmp.eq.s32.totalorder %s16, 1
    %p81 = por %p79, %p80
    %p82 = scmp.ne.s32.totalorder %s73, %s74
    %p83 = scmp.eq.s32.totalorder %s16, 0
    %p84 = por %p82, %p83
    %p85 = scmp.ne.s32.totalorder %s73, %s74
    %p86 = scmp.eq.s32.totalorder %s17, 1
    %p87 = por %p85, %p86
    %p89 = scmp.ne.s32.totalorder %s74, %s88
    %p90 = scmp.eq.s32.totalorder %s17, 0
    %p91 = por %p89, %p90
    %s93 = sadd.s32 %s92, 1
    %p96 = scmp.eq.s32.totalorder %s11, 1
    %p97 = scmp.ne.s32.totalorder %s92, %s94
    %p98 = scmp.eq.s32.totalorder %s11, 0
    %p99 = por %p97, %p98
    %p100 = scmp.ne.s32.totalorder %s92, %s94
    %p101 = scmp.eq.s32.totalorder %s16, 1
    %p102 = por %p100, %p101
    %p103 = scmp.ne.s32.totalorder %s94, %s95
    %p104 = scmp.eq.s32.totalorder %s16, 0
    %p105 = por %p103, %p104
    %p106 = scmp.ne.s32.totalorder %s94, %s95
    %p107 = scmp.eq.s32.totalorder %s17, 1
    %p108 = por %p106, %p107
    %p110 = scmp.ne.s32.totalorder %s95, %s109
    %p111 = scmp.eq.s32.totalorder %s17, 0
    %p112 = por %p110, %p111
    %s114 = sadd.s32 %s113, 1
    %p117 = scmp.eq.s32.totalorder %s11, 1
    %p118 = scmp.ne.s32.totalorder %s113, %s115
    %p119 = scmp.eq.s32.totalorder %s11, 0
    %p120 = por %p118, %p119
    %p121 = scmp.ne.s32.totalorder %s113, %s115
    %p122 = scmp.eq.s32.totalorder %s16, 1
    %p123 = por %p121, %p122
    %p124 = scmp.ne.s32.totalorder %s115, %s116
    %p125 = scmp.eq.s32.totalorder %s16, 0
    %p126 = por %p124, %p125
    %p127 = scmp.ne.s32.totalorder %s115, %s116
    %p128 = scmp.eq.s32.totalorder %s17, 1
    %p129 = por %p127, %p128
    %p131 = scmp.ne.s32.totalorder %s116, %s130
    %p132 = scmp.eq.s32.totalorder %s17, 0
    %p133 = por %p131, %p132
    %s134 = ssub.s32 %s11, %s18
    %p135 = scmp.eq.s32.totalorder %s134, 0
    %s137 = sadd.s32 %s136, 1
    %s138 = scalar_select %p135, %s136, %s137
    %p141 = pneg %p135
    %p142 = scmp.eq.s32.totalorder %s11, 1
    %p143 = por %p141, %p142
    %p144 = scmp.ne.s32.totalorder %s136, %s139
    %p145 = scmp.eq.s32.totalorder %s11, 0
    %p146 = por %p144, %p145
    %p147 = scmp.ne.s32.totalorder %s136, %s139
    %p148 = scmp.eq.s32.totalorder %s16, 1
    %p149 = por %p147, %p148
    %p150 = scmp.ne.s32.totalorder %s139, %s140
    %p151 = scmp.eq.s32.totalorder %s16, 0
    %p152 = por %p150, %p151
    %p153 = scmp.ne.s32.totalorder %s139, %s140
    %p154 = scmp.eq.s32.totalorder %s17, 1
    %p155 = por %p153, %p154
    %p157 = scmp.ne.s32.totalorder %s140, %s156
    %p158 = scmp.eq.s32.totalorder %s17, 0
    %p159 = por %p157, %p158
    %p160 = scmp.le.s32.totalorder 1, %s11
    %p161 = scmp.lt.s32.totalorder %s11, 3
    %p162 = pnand %p160, %p161
    %p163 = pneg %p162
    // Predicated region
    $region9: #{tpu_custom_call.1} parent=5 // pred_check
      _
    $region10: #{tpu_custom_call.1} parent=5 // pred_check_branch
      %165 = sbr.rel (%p162) target = $region12
    $region11: #{tpu_custom_call.1} parent=5 // pred_region
      %s166 = ssub.s32 %s11, 1
      // Predicated region
      $region13: #{tpu_custom_call.1} parent=11 // pred_check
        %p167 = pneg %p84
      $region14: #{tpu_custom_call.1} parent=11 // pred_check_branch
        %169 = sbr.rel (%p167) target = $region16
      $region15: #{tpu_custom_call.1} parent=11 // pred_region
        _
      $region16: #{tpu_custom_call.1} parent=11 // pred_fallthru
        _
      // Predicated region
      $region17: #{tpu_custom_call.1} parent=11 // pred_check
        %p170 = pneg %p105
      $region18: #{tpu_custom_call.1} parent=11 // pred_check_branch
        %172 = sbr.rel (%p170) target = $region20
      $region19: #{tpu_custom_call.1} parent=11 // pred_region
        _
      $region20: #{tpu_custom_call.1} parent=11 // pred_fallthru
        _
      // Predicated region
      $region21: #{tpu_custom_call.1} parent=11 // pred_check
        %p173 = pneg %p126
      $region22: #{tpu_custom_call.1} parent=11 // pred_check_branch
        %175 = sbr.rel (%p173) target = $region24
      $region23: #{tpu_custom_call.1} parent=11 // pred_region
        _
      $region24: #{tpu_custom_call.1} parent=11 // pred_fallthru
        _
    $region12: #{tpu_custom_call.1} parent=5 // pred_fallthru
      _
    %p176 = scmp.lt.s32.totalorder %s11, 2
    // Predicated region
    $region25: #{tpu_custom_call.1} parent=5 // pred_check
      %p177 = pneg %p176
    $region26: #{tpu_custom_call.1} parent=5 // pred_check_branch
      %179 = sbr.rel (%p177) target = $region28
    $region27: #{tpu_custom_call.1} parent=5 // pred_region
      // Predicated region
      $region29: #{tpu_custom_call.1} parent=27 // pred_check
        %p180 = pneg %p31
      $region30: #{tpu_custom_call.1} parent=27 // pred_check_branch
        %182 = sbr.rel (%p180) target = $region32
      $region31: #{tpu_custom_call.1} parent=27 // pred_region
        %p183 = scmp.lt.s32.totalorder %s11, 1
        %s184 = scalar_select %p183, %s11, 1
        %s185 = smul.addr %s184, 9
        %s186 = smul.addr %s185, 8
        %s187 = scalar_lea.vmem %s0, %s186
      $region32: #{tpu_custom_call.1} parent=27 // pred_fallthru
        _
      // Predicated region
      $region33: #{tpu_custom_call.1} parent=27 // pred_check
        %p188 = pneg %p57
      $region34: #{tpu_custom_call.1} parent=27 // pred_check_branch
        %190 = sbr.rel (%p188) target = $region36
      $region35: #{tpu_custom_call.1} parent=27 // pred_region
        %p191 = scmp.lt.s32.totalorder %s11, 1
        %s192 = scalar_select %p191, %s11, 1
        %s193 = smul.addr %s192, 9
        %s194 = smul.addr %s193, 8
        %s195 = scalar_lea.vmem %s1, %s194
      $region36: #{tpu_custom_call.1} parent=27 // pred_fallthru
        _
    $region28: #{tpu_custom_call.1} parent=5 // pred_fallthru
      _
    %p196 = scmp.le.s32.totalorder 1, %s11
    %p197 = scmp.lt.s32.totalorder %s11, 3
    %p198 = pnand %p196, %p197
    %p199 = pneg %p198
    // Predicated region
    $region37: #{tpu_custom_call.1} parent=5 // pred_check
      _
    $region38: #{tpu_custom_call.1} parent=5 // pred_check_branch
      %201 = sbr.rel (%p198) target = $region40
    $region39: #{tpu_custom_call.1} parent=5 // pred_region
      %s202 = ssub.s32 %s11, 1
      %p203 = scmp.lt.s32.totalorder %s16, 1
      %s204 = scalar_select %p203, %s16, 1
      %s205 = smul.addr %s204, 9
      %s206 = smul.addr %s205, 8
      %s207 = scalar_lea.vmem %s0, %s206
      %p208 = pneg %p37
      %p209 = pneg %p34
      %p210 = scmp.lt.s32.totalorder %s16, 1
      %s211 = scalar_select %p210, %s16, 1
      %s212 = smul.addr %s211, 9
      %s213 = smul.addr %s212, 8
      %s214 = scalar_lea.vmem %s1, %s213
      %p215 = pneg %p63
      %p216 = pneg %p60
      %p217 = pneg %p84
      %p218 = pneg %p81
      %p219 = pneg %p105
      %p220 = pneg %p102
      %p221 = pneg %p126
      %p222 = pneg %p123
      %p223 = pneg %p152
      %p224 = pneg %p149
      %p225 = scmp.lt.s32.totalorder %s16, 1
      %s226 = scalar_select %p225, %s16, 1
      %s227 = smul.addr %s226, 4
      %s228 = smul.addr %s227, 8
      %s229 = scalar_lea.vmem %s5, %s228
      %p230 = scmp.lt.s32.totalorder %s16, 1
      %s231 = scalar_select %p230, %s16, 1
      %s232 = smul.addr %s231, 9
      %s233 = smul.addr %s232, 8
      %s234 = scalar_lea.vmem %s0, %s233
      %p235 = scmp.lt.s32.totalorder %s16, 1
      %s236 = scalar_select %p235, %s16, 1
      %s237 = smul.addr %s236, 9
      %s238 = smul.addr %s237, 8
      %s239 = scalar_lea.vmem %s1, %s238
      %p240 = scmp.lt.s32.totalorder %s16, 1
      %s241 = scalar_select %p240, %s16, 1
      %s242 = smul.addr %s241, 4
      %s243 = smul.addr %s242, 8
      %s244 = scalar_lea.vmem %s5, %s243
      %v246 = vld [vmem:[%s234] sm:$0xff]
      %v247 = vld [vmem:[%s234 + $0x8] sm:$0xff]
      %v248 = vld [vmem:[%s234 + $0x10] sm:$0xff]
      %v249 = vld [vmem:[%s234 + $0x18] sm:$0xff]
      %v250 = vld [vmem:[%s234 + $0x20] sm:$0xff]
      %v251 = vld [vmem:[%s234 + $0x28] sm:$0xff]
      %v252 = vld [vmem:[%s234 + $0x30] sm:$0xff]
      %v253 = vld [vmem:[%s234 + $0x38] sm:$0xff]
      %v254 = vld [vmem:[%s234 + $0x40] sm:$0x1]
      %v255 = vpack.c.bf16 %v247, %v246
      %v256 = vpack.c.bf16 %v249, %v248
      %v257 = vpack.c.bf16 %v251, %v250
      %v258 = vpack.c.bf16 %v253, %v252
      %v259 = vpack.c.bf16 %v254, %v254
      %v260 = vld [vmem:[%s239] sm:$0xff]
      %v261 = vld [vmem:[%s239 + $0x8] sm:$0xff]
      %v262 = vld [vmem:[%s239 + $0x10] sm:$0xff]
      %v263 = vld [vmem:[%s239 + $0x18] sm:$0xff]
      %v264 = vld [vmem:[%s239 + $0x20] sm:$0xff]
      %v265 = vld [vmem:[%s239 + $0x28] sm:$0xff]
      %v266 = vld [vmem:[%s239 + $0x30] sm:$0xff]
      %v267 = vld [vmem:[%s239 + $0x38] sm:$0xff]
      %v268 = vld [vmem:[%s239 + $0x40] sm:$0x1]
      %v269 = vpack.c.bf16 %v261, %v260
      %v270 = vpack.c.bf16 %v263, %v262
      %v271 = vpack.c.bf16 %v265, %v264
      %v272 = vpack.c.bf16 %v267, %v266
      %v273 = vpack.c.bf16 %v268, %v268
      %v274 = vld [vmem:[%s2] sm:$0xf]
      %v275 = vld [vmem:[%s2 + $0x4] sm:$0xf]
      %v276 = vld [vmem:[%s2 + $0x8] sm:$0xf]
      %v277 = vld [vmem:[%s2 + $0xc] sm:$0xf]
      %v278 = vld [vmem:[%s2 + $0x10] sm:$0xf]
      %v279 = vld [vmem:[%s2 + $0x14] sm:$0xf]
      %v280 = vld [vmem:[%s2 + $0x18] sm:$0xf]
      %v281 = vld [vmem:[%s2 + $0x1c] sm:$0xf]
      %v282 = vld [vmem:[%s2 + $0x20] sm:$0xf]
      %v283 = vld [vmem:[%s2 + $0x24] sm:$0xf]
      %v284 = vld [vmem:[%s2 + $0x28] sm:$0xf]
      %v285 = vld [vmem:[%s2 + $0x2c] sm:$0xf]
      %v286 = vld [vmem:[%s2 + $0x30] sm:$0xf]
      %v287 = vld [vmem:[%s2 + $0x34] sm:$0xf]
      %v288 = vld [vmem:[%s2 + $0x38] sm:$0xf]
      %v289 = vld [vmem:[%s2 + $0x3c] sm:$0xf]
      %v290 = vld [vmem:[%s3] sm:$0xf]
      %v291 = vld [vmem:[%s3 + $0x4] sm:$0xf]
      %v292 = vld [vmem:[%s3 + $0x8] sm:$0xf]
      %v293 = vld [vmem:[%s3 + $0xc] sm:$0xf]
      %v294 = vld [vmem:[%s3 + $0x10] sm:$0xf]
      %v295 = vld [vmem:[%s3 + $0x14] sm:$0xf]
      %v296 = vld [vmem:[%s3 + $0x18] sm:$0xf]
      %v297 = vld [vmem:[%s3 + $0x1c] sm:$0xf]
      %v298 = vld [vmem:[%s3 + $0x20] sm:$0xf]
      %v299 = vld [vmem:[%s3 + $0x24] sm:$0xf]
      %v300 = vld [vmem:[%s3 + $0x28] sm:$0xf]
      %v301 = vld [vmem:[%s3 + $0x2c] sm:$0xf]
      %v302 = vld [vmem:[%s3 + $0x30] sm:$0xf]
      %v303 = vld [vmem:[%s3 + $0x34] sm:$0xf]
      %v304 = vld [vmem:[%s3 + $0x38] sm:$0xf]
      %v305 = vld [vmem:[%s3 + $0x3c] sm:$0xf]
      %v322 = vunpack.c.l.b16 %v290
      %v323 = vunpack.c.l.b16 %v291
      %v324 = vunpack.c.l.b16 %v292
      %v325 = vunpack.c.l.b16 %v293
      %v326 = vunpack.c.l.b16 %v294
      %v327 = vunpack.c.l.b16 %v295
      %v328 = vunpack.c.l.b16 %v296
      %v329 = vunpack.c.l.b16 %v297
      %v330 = vunpack.c.l.b16 %v298
      %v331 = vunpack.c.l.b16 %v299
      %v332 = vunpack.c.l.b16 %v300
      %v333 = vunpack.c.l.b16 %v301
      %v334 = vunpack.c.l.b16 %v302
      %v335 = vunpack.c.l.b16 %v303
      %v336 = vunpack.c.l.b16 %v304
      %v337 = vunpack.c.l.b16 %v305
      %v338 = vpack.c.b16 %v323, %v322
      %v339 = vpack.c.b16 %v325, %v324
      %v340 = vpack.c.b16 %v327, %v326
      %v341 = vpack.c.b16 %v329, %v328
      %v342 = vpack.c.b16 %v331, %v330
      %v343 = vpack.c.b16 %v333, %v332
      %v344 = vpack.c.b16 %v335, %v334
      %v345 = vpack.c.b16 %v337, %v336
      %vm346 = vcmask 531456
      %v348 = vsel %vm346, %v338, 0
      %v351 = vsel %vm346, %v339, 0
      %v354 = vsel %vm346, %v340, 0
      %v357 = vsel %vm346, %v341, 0
      %v360 = vsel %vm346, %v342, 0
      %v363 = vsel %vm346, %v343, 0
      %v366 = vsel %vm346, %v344, 0
      %v369 = vsel %vm346, %v345, 0
      %vm371 = vcmask 1040384
      %v372 = vsel 0, 4294967295, 65535
      %v373 = vsel %vm371, %v372, 0
      %v375 = vand.u32 %v273, %v373
      %377 = vmatprep.subr.bf16.mxu0 0
      %378 = vmatpush1.bf16.msra.mxu0 %v269
      %379 = vmatprep.subr.bf16.mxu0 0
      %380 = vmatpush1.bf16.msra.mxu0 %v270
      %381 = vmatprep.subr.bf16.mxu0 0
      %382 = vmatpush1.bf16.msra.mxu0 %v271
      %383 = vmatprep.subr.bf16.mxu0 0
      %384 = vmatpush1.bf16.msra.mxu0 %v272
      %385 = vmatprep.subr.bf16.mxu0 0
      %386 = vmatpush1.bf16.msra.mxu0 %v375
      %387 = vmatprep.subr.bf16.mxu0 0
      %388 = vmatpush1.bf16.msra.mxu0 0
      %389 = vmatprep.subr.bf16.mxu0 0
      %390 = vmatpush1.bf16.msra.mxu0 0
      %391 = vmatprep.subr.bf16.mxu0 0
      %392 = vmatpush1.bf16.msra.mxu0 0
      %393 = vmatprep.subr.bf16.mxu0 0
      %394 = vmatpush1.bf16.msra.mxu0 0
      %395 = vmatprep.subr.bf16.mxu0 0
      %396 = vmatpush1.bf16.msra.mxu0 0
      %397 = vmatprep.subr.bf16.mxu0 0
      %398 = vmatpush1.bf16.msra.mxu0 0
      %399 = vmatprep.subr.bf16.mxu0 0
      %400 = vmatpush1.bf16.msra.mxu0 0
      %401 = vmatprep.subr.bf16.mxu0 0
      %402 = vmatpush1.bf16.msra.mxu0 0
      %403 = vmatprep.subr.bf16.mxu0 0
      %404 = vmatpush1.bf16.msra.mxu0 0
      %405 = vmatprep.subr.bf16.mxu0 0
      %406 = vmatpush1.bf16.msra.mxu0 0
      %407 = vmatprep.subr.bf16.mxu0 0
      %408 = vmatpush1.bf16.msra.mxu0 0
      %409 = vmatprep.mubr.bf16.mxu0 0
      %410 = vmatmul.mubr.bf16.gmra.mrb[0].mxu0 %v348
      %v411 = vpop.f32.mrb[0].mxu0
      %v412 = vadd.f32 0.0, %v411
      %v413 = vpop.f32.mrb[0].mxu0
      %v414 = vpop.f32.mrb[0].mxu0
      %v415 = vadd.f32 0.0, %v414
      %v416 = vpop.f32.mrb[0].mxu0
      %417 = vmatprep.mubr.bf16.mxu0 0
      %418 = vmatmul.mubr.bf16.gmra.mrb[0].mxu0 %v351
      %v419 = vpop.f32.mrb[0].mxu0
      %v420 = vadd.f32 0.0, %v419
      %v421 = vpop.f32.mrb[0].mxu0
      %v422 = vpop.f32.mrb[0].mxu0
      %v423 = vadd.f32 0.0, %v422
      %v424 = vpop.f32.mrb[0].mxu0
      %425 = vmatprep.mubr.bf16.mxu0 0
      %426 = vmatmul.mubr.bf16.gmra.mrb[0].mxu0 %v354
      %v427 = vpop.f32.mrb[0].mxu0
      %v428 = vadd.f32 0.0, %v427
      %v429 = vpop.f32.mrb[0].mxu0
      %v430 = vpop.f32.mrb[0].mxu0
      %v431 = vadd.f32 0.0, %v430
      %v432 = vpop.f32.mrb[0].mxu0
      %433 = vmatprep.mubr.bf16.mxu0 0
      %434 = vmatmul.mubr.bf16.gmra.mrb[0].mxu0 %v357
      %v435 = vpop.f32.mrb[0].mxu0
      %v436 = vadd.f32 0.0, %v435
      %v437 = vpop.f32.mrb[0].mxu0
      %v438 = vpop.f32.mrb[0].mxu0
      %v439 = vadd.f32 0.0, %v438
      %v440 = vpop.f32.mrb[0].mxu0
      %441 = vmatprep.mubr.bf16.mxu0 0
      %442 = vmatmul.mubr.bf16.gmra.mrb[0].mxu0 %v360
      %v443 = vpop.f32.mrb[0].mxu0
      %v444 = vadd.f32 0.0, %v443
      %v445 = vpop.f32.mrb[0].mxu0
      %v446 = vpop.f32.mrb[0].mxu0
      %v447 = vadd.f32 0.0, %v446
      %v448 = vpop.f32.mrb[0].mxu0
      %449 = vmatprep.mubr.bf16.mxu0 0
      %450 = vmatmul.mubr.bf16.gmra.mrb[0].mxu0 %v363
      %v451 = vpop.f32.mrb[0].mxu0
      %v452 = vadd.f32 0.0, %v451
      %v453 = vpop.f32.mrb[0].mxu0
      %v454 = vpop.f32.mrb[0].mxu0
      %v455 = vadd.f32 0.0, %v454
      %v456 = vpop.f32.mrb[0].mxu0
      %457 = vmatprep.mubr.bf16.mxu0 0
      %458 = vmatmul.mubr.bf16.gmra.mrb[0].mxu0 %v366
      %v459 = vpop.f32.mrb[0].mxu0
      %v460 = vadd.f32 0.0, %v459
      %v461 = vpop.f32.mrb[0].mxu0
      %v462 = vpop.f32.mrb[0].mxu0
      %v463 = vadd.f32 0.0, %v462
      %v464 = vpop.f32.mrb[0].mxu0
      %465 = vmatprep.mubr.bf16.mxu0 0
      %466 = vmatmul.mubr.bf16.gmra.mrb[0].mxu0 %v369
      %v467 = vpop.f32.mrb[0].mxu0
      %v468 = vadd.f32 0.0, %v467
      %v469 = vpop.f32.mrb[0].mxu0
      %v470 = vpop.f32.mrb[0].mxu0
      %v471 = vadd.f32 0.0, %v470
      %v472 = vpop.f32.mrb[0].mxu0
      %473 = vdwg.mxu0
      %v490 = vunpack.c.l.b16 %v274
      %v491 = vunpack.c.l.b16 %v275
      %v492 = vunpack.c.l.b16 %v276
      %v493 = vunpack.c.l.b16 %v277
      %v494 = vunpack.c.l.b16 %v278
      %v495 = vunpack.c.l.b16 %v279
      %v496 = vunpack.c.l.b16 %v280
      %v497 = vunpack.c.l.b16 %v281
      %v498 = vunpack.c.l.b16 %v282
      %v499 = vunpack.c.l.b16 %v283
      %v500 = vunpack.c.l.b16 %v284
      %v501 = vunpack.c.l.b16 %v285
      %v502 = vunpack.c.l.b16 %v286
      %v503 = vunpack.c.l.b16 %v287
      %v504 = vunpack.c.l.b16 %v288
      %v505 = vunpack.c.l.b16 %v289
      %v506 = vpack.c.b16 %v491, %v490
      %v507 = vpack.c.b16 %v493, %v492
      %v508 = vpack.c.b16 %v495, %v494
      %v509 = vpack.c.b16 %v497, %v496
      %v510 = vpack.c.b16 %v499, %v498
      %v511 = vpack.c.b16 %v501, %v500
      %v512 = vpack.c.b16 %v503, %v502
      %v513 = vpack.c.b16 %v505, %v504
      %v515 = vsel %vm346, %v506, 0
      %v518 = vsel %vm346, %v507, 0
      %v521 = vsel %vm346, %v508, 0
      %v524 = vsel %vm346, %v509, 0
      %v527 = vsel %vm346, %v510, 0
      %v530 = vsel %vm346, %v511, 0
      %v533 = vsel %vm346, %v512, 0
      %v536 = vsel %vm346, %v513, 0
      %v539 = vand.u32 %v259, %v373
      %541 = vmatprep.subr.bf16.mxu0 0
      %542 = vmatpush1.bf16.msra.mxu0 %v255
      %543 = vmatprep.subr.bf16.mxu0 0
      %544 = vmatpush1.bf16.msra.mxu0 %v256
      %545 = vmatprep.subr.bf16.mxu0 0
      %546 = vmatpush1.bf16.msra.mxu0 %v257
      %547 = vmatprep.subr.bf16.mxu0 0
      %548 = vmatpush1.bf16.msra.mxu0 %v258
      %549 = vmatprep.subr.bf16.mxu0 0
      %550 = vmatpush1.bf16.msra.mxu0 %v539
      %551 = vmatprep.subr.bf16.mxu0 0
      %552 = vmatpush1.bf16.msra.mxu0 0
      %553 = vmatprep.subr.bf16.mxu0 0
      %554 = vmatpush1.bf16.msra.mxu0 0
      %555 = vmatprep.subr.bf16.mxu0 0
      %556 = vmatpush1.bf16.msra.mxu0 0
      %557 = vmatprep.subr.bf16.mxu0 0
      %558 = vmatpush1.bf16.msra.mxu0 0
      %559 = vmatprep.subr.bf16.mxu0 0
      %560 = vmatpush1.bf16.msra.mxu0 0
      %561 = vmatprep.subr.bf16.mxu0 0
      %562 = vmatpush1.bf16.msra.mxu0 0
      %563 = vmatprep.subr.bf16.mxu0 0
      %564 = vmatpush1.bf16.msra.mxu0 0
      %565 = vmatprep.subr.bf16.mxu0 0
      %566 = vmatpush1.bf16.msra.mxu0 0
      %567 = vmatprep.subr.bf16.mxu0 0
      %568 = vmatpush1.bf16.msra.mxu0 0
      %569 = vmatprep.subr.bf16.mxu0 0
      %570 = vmatpush1.bf16.msra.mxu0 0
      %571 = vmatprep.subr.bf16.mxu0 0
      %572 = vmatpush1.bf16.msra.mxu0 0
      %573 = vmatprep.mubr.bf16.mxu0 0
      %574 = vmatmul.mubr.bf16.gmra.mrb[0].mxu0 %v515
      %v575 = vpop.f32.mrb[0].mxu0
      %v576 = vadd.f32 %v412, %v575
      %v577 = vpop.f32.mrb[0].mxu0
      %v578 = vpop.f32.mrb[0].mxu0
      %v579 = vadd.f32 %v415, %v578
      %v580 = vpop.f32.mrb[0].mxu0
      %581 = vmatprep.mubr.bf16.mxu0 0
      %582 = vmatmul.mubr.bf16.gmra.mrb[0].mxu0 %v518
      %v583 = vpop.f32.mrb[0].mxu0
      %v584 = vadd.f32 %v420, %v583
      %v585 = vpop.f32.mrb[0].mxu0
      %v586 = vpop.f32.mrb[0].mxu0
      %v587 = vadd.f32 %v423, %v586
      %v588 = vpop.f32.mrb[0].mxu0
      %589 = vmatprep.mubr.bf16.mxu0 0
      %590 = vmatmul.mubr.bf16.gmra.mrb[0].mxu0 %v521
      %v591 = vpop.f32.mrb[0].mxu0
      %v592 = vadd.f32 %v428, %v591
      %v593 = vpop.f32.mrb[0].mxu0
      %v594 = vpop.f32.mrb[0].mxu0
      %v595 = vadd.f32 %v431, %v594
      %v596 = vpop.f32.mrb[0].mxu0
      %597 = vmatprep.mubr.bf16.mxu0 0
      %598 = vmatmul.mubr.bf16.gmra.mrb[0].mxu0 %v524
      %v599 = vpop.f32.mrb[0].mxu0
      %v600 = vadd.f32 %v436, %v599
      %v601 = vpop.f32.mrb[0].mxu0
      %v602 = vpop.f32.mrb[0].mxu0
      %v603 = vadd.f32 %v439, %v602
      %v604 = vpop.f32.mrb[0].mxu0
      %605 = vmatprep.mubr.bf16.mxu0 0
      %606 = vmatmul.mubr.bf16.gmra.mrb[0].mxu0 %v527
      %v607 = vpop.f32.mrb[0].mxu0
      %v608 = vadd.f32 %v444, %v607
      %v609 = vpop.f32.mrb[0].mxu0
      %v610 = vpop.f32.mrb[0].mxu0
      %v611 = vadd.f32 %v447, %v610
      %v612 = vpop.f32.mrb[0].mxu0
      %613 = vmatprep.mubr.bf16.mxu0 0
      %614 = vmatmul.mubr.bf16.gmra.mrb[0].mxu0 %v530
      %v615 = vpop.f32.mrb[0].mxu0
      %v616 = vadd.f32 %v452, %v615
      %v617 = vpop.f32.mrb[0].mxu0
      %v618 = vpop.f32.mrb[0].mxu0
      %v619 = vadd.f32 %v455, %v618
      %v620 = vpop.f32.mrb[0].mxu0
      %621 = vmatprep.mubr.bf16.mxu0 0
      %622 = vmatmul.mubr.bf16.gmra.mrb[0].mxu0 %v533
      %v623 = vpop.f32.mrb[0].mxu0
      %v624 = vadd.f32 %v460, %v623
      %v625 = vpop.f32.mrb[0].mxu0
      %v626 = vpop.f32.mrb[0].mxu0
      %v627 = vadd.f32 %v463, %v626
      %v628 = vpop.f32.mrb[0].mxu0
      %629 = vmatprep.mubr.bf16.mxu0 0
      %630 = vmatmul.mubr.bf16.gmra.mrb[0].mxu0 %v536
      %v631 = vpop.f32.mrb[0].mxu0
      %v632 = vadd.f32 %v468, %v631
      %v633 = vpop.f32.mrb[0].mxu0
      %v634 = vpop.f32.mrb[0].mxu0
      %v635 = vadd.f32 %v471, %v634
      %v636 = vpop.f32.mrb[0].mxu0
      %637 = vdwg.mxu0
      %vm638 = vcmask 64512
      %v639 = vsel %vm638, %v576, 0.0
      %v640 = vsel %vm638, %v579, 0.0
      %v641 = vsel %vm638, %v584, 0.0
      %v642 = vsel %vm638, %v587, 0.0
      %647 = vrot.lane.b32.xlu0 %v592, 1
      %v648 = vpop.permute.xlu0 %647
      %649 = vrot.lane.b32.xlu0 %v595, 1
      %v650 = vpop.permute.xlu0 %649
      %651 = vrot.lane.b32.xlu0 %v600, 1
      %v652 = vpop.permute.xlu0 %651
      %653 = vrot.lane.b32.xlu0 %v603, 1
      %v654 = vpop.permute.xlu0 %653
      %vm659 = vcmask 7168
      %v660 = vsel %vm659, 0.0, %v648
      %v661 = vsel %vm659, 0.0, %v650
      %v662 = vsel %vm659, 0.0, %v652
      %v663 = vsel %vm659, 0.0, %v654
      %vm664 = vcmask 72704
      %v665 = vsel %vm664, %v660, 0.0
      %v666 = vsel %vm664, %v661, 0.0
      %v667 = vsel %vm664, %v662, 0.0
      %v668 = vsel %vm664, %v663, 0.0
      %v669 = vadd.f32 %v639, %v665
      %v670 = vadd.f32 %v640, %v666
      %v671 = vadd.f32 %v641, %v667
      %v672 = vadd.f32 %v642, %v668
      %677 = vrot.lane.b32.xlu0 %v608, 2
      %v678 = vpop.permute.xlu0 %677
      %679 = vrot.lane.b32.xlu0 %v611, 2
      %v680 = vpop.permute.xlu0 %679
      %681 = vrot.lane.b32.xlu0 %v616, 2
      %v682 = vpop.permute.xlu0 %681
      %683 = vrot.lane.b32.xlu0 %v619, 2
      %v684 = vpop.permute.xlu0 %683
      %vm689 = vcmask 15360
      %v690 = vsel %vm689, 0.0, %v678
      %v691 = vsel %vm689, 0.0, %v680
      %v692 = vsel %vm689, 0.0, %v682
      %v693 = vsel %vm689, 0.0, %v684
      %vm694 = vcmask 80896
      %v695 = vsel %vm694, %v690, 0.0
      %v696 = vsel %vm694, %v691, 0.0
      %v697 = vsel %vm694, %v692, 0.0
      %v698 = vsel %vm694, %v693, 0.0
      %v699 = vadd.f32 %v669, %v695
      %v700 = vadd.f32 %v670, %v696
      %v701 = vadd.f32 %v671, %v697
      %v702 = vadd.f32 %v672, %v698
      %707 = vrot.lane.b32.xlu0 %v624, 3
      %v708 = vpop.permute.xlu0 %707
      %709 = vrot.lane.b32.xlu0 %v627, 3
      %v710 = vpop.permute.xlu0 %709
      %711 = vrot.lane.b32.xlu0 %v632, 3
      %v712 = vpop.permute.xlu0 %711
      %713 = vrot.lane.b32.xlu0 %v635, 3
      %v714 = vpop.permute.xlu0 %713
      %vm719 = vcmask 23552
      %v720 = vsel %vm719, 0.0, %v708
      %v721 = vsel %vm719, 0.0, %v710
      %v722 = vsel %vm719, 0.0, %v712
      %v723 = vsel %vm719, 0.0, %v714
      %v724 = vadd.f32 %v699, %v720
      %v725 = vadd.f32 %v700, %v721
      %v726 = vadd.f32 %v701, %v722
      %v727 = vadd.f32 %v702, %v723
      %v728 = vld [vmem:[%s4] sm:$0xff]
      %v729 = vld [vmem:[%s4 + $0x8] sm:$0xff]
      %v730 = vld [vmem:[%s4 + $0x10] sm:$0xff]
      %v731 = vld [vmem:[%s4 + $0x18] sm:$0xff]
      %v732 = vmul.f32 %v724, %v728
      %v733 = vmul.f32 %v725, %v729
      %v734 = vmul.f32 %v726, %v730
      %v735 = vmul.f32 %v727, %v731
      %vm736 = vcmask 89088
      %737 = vst.msk [vmem:[%s244] sm:$0xff] %vm736, %v732
      %738 = vst.msk [vmem:[%s244 + $0x8] sm:$0xff] %vm736, %v733
      %739 = vst.msk [vmem:[%s244 + $0x10] sm:$0xff] %vm736, %v734
      %740 = vst.msk [vmem:[%s244 + $0x18] sm:$0xff] %vm736, %v735
      %p741 = scmp.lt.s32.totalorder %s16, 1
      %s742 = scalar_select %p741, %s16, 1
      %s743 = smul.addr %s742, 4
      %s744 = smul.addr %s743, 8
      %s745 = scalar_lea.vmem %s5, %s744
      // Predicated region
      $region41: #{tpu_custom_call.1} parent=39 // pred_check
        %p746 = pneg %p149
      $region42: #{tpu_custom_call.1} parent=39 // pred_check_branch
        %748 = sbr.rel (%p746) target = $region44
      $region43: #{tpu_custom_call.1} parent=39 // pred_region
        _
      $region44: #{tpu_custom_call.1} parent=39 // pred_fallthru
        _
    $region40: #{tpu_custom_call.1} parent=5 // pred_fallthru
      _
    %p749 = scmp.le.s32.totalorder 2, %s11
    // Predicated region
    $region45: #{tpu_custom_call.1} parent=5 // pred_check
      %p750 = pneg %p749
    $region46: #{tpu_custom_call.1} parent=5 // pred_check_branch
      %752 = sbr.rel (%p750) target = $region48
    $region47: #{tpu_custom_call.1} parent=5 // pred_region
      %s753 = ssub.s32 %s11, 2
      // Predicated region
      $region49: #{tpu_custom_call.1} parent=47 // pred_check
        %p754 = pneg %p155
      $region50: #{tpu_custom_call.1} parent=47 // pred_check_branch
        %756 = sbr.rel (%p754) target = $region52
      $region51: #{tpu_custom_call.1} parent=47 // pred_region
        %p757 = scmp.lt.s32.totalorder %s17, 1
        %s758 = scalar_select %p757, %s17, 1
        %s759 = smul.addr %s758, 4
        %s760 = smul.addr %s759, 8
        %s761 = scalar_lea.vmem %s5, %s760
      $region52: #{tpu_custom_call.1} parent=47 // pred_fallthru
        _
    $region48: #{tpu_custom_call.1} parent=5 // pred_fallthru
      _
  $region6: #{tpu_custom_call.1} parent=0 // loop_footer
    %s15 = sadd.s32 1, %s11
  $region7: #{tpu_custom_call.1} parent=0 // loop_footer_branch
    %10 = sbr.rel target = $region3
  $region8: #{tpu_custom_call.1} parent=0 // loop_exit
    _

</llo_original>
